<compile_context>
chip_gen: v7x
topology: tpu7x:2x2x1
jax: 0.10.0
libtpu: 0.0.40
codegen_flags: <defaults>
</compile_context>

<pallas_src>
import functools

import jax
import jax.numpy as jnp
from jax import lax
from jax.experimental import pallas as pl
from jax.experimental.pallas import tpu as pltpu


def _round_up(a: int, m: int) -> int:
    return ((a + m - 1) // m) * m


def _linear_kernel(x_ref, w_ref, b_ref, o_ref, *, d_in, tile_k, mask_k_tail):
    """One (TILE_B, TILE_K) x-tile against a (TILE_K, N_PAD) weight tile.

    The f32 output block is resident across the K (reduction) axis: it is
    initialized with the bias on the first K step and accumulated into
    directly — no scratch accumulator, no epilogue add/copy.
    """
    k = pl.program_id(1)

    @pl.when(k == 0)
    def _():
        o_ref[...] = jnp.broadcast_to(b_ref[...], o_ref.shape)

    x = x_ref[...]
    if mask_k_tail:
        # Ragged d_in: the last K block reads past the end of x (garbage,
        # possibly NaN/Inf).  Zero those columns; the weight is zero-padded
        # there as well, so the tail contributes exactly 0.
        col = lax.broadcasted_iota(jnp.int32, x.shape, 1)
        x = jnp.where(k * tile_k + col < d_in, x, 0.0)

    o_ref[...] += jnp.dot(x, w_ref[...], preferred_element_type=jnp.float32)


@jax.jit
def lin_classifier_forward(x, weight, bias):
    """Equivalent of PyTorch nn.Linear: out = x @ weight.T + bias.

    x:      (B, d_in)        weight: (n_class, d_in)   bias: (n_class,)
    returns (B, n_class) in x.dtype (f32 for the spec'd module).
    """
    B, d_in = x.shape
    n_class = weight.shape[0]

    # ---- static tiling decisions -------------------------------------------
    N_PAD = _round_up(n_class, 128)              # lane-dense output last dim

    VMEM_BUDGET = 24 * 1024 * 1024               # in-flight block budget (bytes)
    VMEM_LIMIT = 32 * 1024 * 1024                # requested scoped VMEM

    # K (reduction) axis: prefer a single full-K step — the weight is DMA'd
    # once and stays VMEM-resident, and there are no accumulator RMW passes.
    tile_b_cap = min(512, _round_up(B, 8))
    full_k_bytes = 4 * (2 * tile_b_cap * d_in        # x blocks (double-buffered)
                        + 2 * d_in * N_PAD           # weight blocks
                        + 2 * tile_b_cap * N_PAD     # f32 output blocks
                        + 2 * N_PAD)                 # bias
    if full_k_bytes <= VMEM_BUDGET:
        TILE_K, n_k = d_in, 1                    # block dim == array dim: exact
    else:
        # Large d_in: stream K in ~2K-column chunks (multiples of 128).
        k128 = _round_up(d_in, 128)
        n_k = pl.cdiv(k128, 2048)
        TILE_K = _round_up(pl.cdiv(k128, n_k), 128)
        if TILE_K >= d_in:                       # pathological huge-n_class case
            TILE_K, n_k = d_in, 1
        else:
            n_k = pl.cdiv(d_in, TILE_K)
    K_TOTAL = n_k * TILE_K                       # weight K extent after padding
    mask_k_tail = (n_k > 1) and (d_in % TILE_K != 0)

    # Batch axis: >= 2 tiles (v7x megacore), >= 4 tiles when K is a single
    # step (pipelining needs iterations), tiles capped near 512 rows, and
    # sized as cdiv(B, n_tiles) rounded to 8 to minimize pad/garbage rows.
    min_b_tiles = 4 if n_k == 1 else 2
    n_b = max(min_b_tiles, pl.cdiv(B, 512))
    TILE_B = _round_up(pl.cdiv(B, n_b), 8)
    if TILE_B > B:                               # tiny batch: use the full dim
        TILE_B = B
    n_b = pl.cdiv(B, TILE_B)

    # ---- parameter prep (one-time, parameter-sized copies; x is untouched) --
    w_t = weight.T                               # (d_in, n_class)
    if (K_TOTAL, N_PAD) != (d_in, n_class):
        w_t = jnp.pad(w_t, ((0, K_TOTAL - d_in), (0, N_PAD - n_class)))
    b_p = bias if N_PAD == n_class else jnp.pad(bias, (0, N_PAD - n_class))
    b_p = b_p.reshape(1, N_PAD)

    kernel = functools.partial(_linear_kernel, d_in=d_in, tile_k=TILE_K,
                               mask_k_tail=mask_k_tail)

    out_padded = pl.pallas_call(
        kernel,
        out_shape=jax.ShapeDtypeStruct((B, N_PAD), jnp.float32),
        grid=(n_b, n_k),
        in_specs=[
            pl.BlockSpec((TILE_B, TILE_K), lambda i, k: (i, k)),
            pl.BlockSpec((TILE_K, N_PAD), lambda i, k: (k, 0)),
            pl.BlockSpec((1, N_PAD), lambda i, k: (0, 0)),
        ],
        out_specs=pl.BlockSpec((TILE_B, N_PAD), lambda i, k: (i, 0)),
        compiler_params=pltpu.CompilerParams(
            dimension_semantics=("parallel", "arbitrary"),
            vmem_limit_bytes=VMEM_LIMIT),
    )(x, w_t, b_p)

    return out_padded[:, :n_class].astype(x.dtype)


def init_lin_classifier(key, d_in, n_class):
    """Deterministic init matching nn.Linear's default (uniform +/- 1/sqrt(d_in))."""
    kw, kb = jax.random.split(key)
    bound = 1.0 / (d_in ** 0.5)
    weight = jax.random.uniform(kw, (n_class, d_in), jnp.float32, -bound, bound)
    bias = jax.random.uniform(kb, (n_class,), jnp.float32, -bound, bound)
    return weight, bias


if __name__ == "__main__":
    key = jax.random.PRNGKey(0)
    k_x, k_p = jax.random.split(key)

    # --- small shape consistent with the module spec (full-K path) ----------
    B, d_in, n_class = 8, 32, 10
    x = jax.random.normal(k_x, (B, d_in), jnp.float32)
    weight, bias = init_lin_classifier(k_p, d_in, n_class)

    out = jax.block_until_ready(lin_classifier_forward(x, weight, bias))
    ref = x @ weight.T + bias
    assert out.shape == (B, n_class)
    assert jnp.allclose(out, ref, atol=1e-5, rtol=1e-5), "small-shape mismatch"

    # --- ragged B + tiled K + masked K-tail path -----------------------------
    k_x2, k_p2 = jax.random.split(jax.random.PRNGKey(1))
    B2, d_in2, n_class2 = 300, 7500, 37
    x2 = jax.random.normal(k_x2, (B2, d_in2), jnp.float32)
    w2, b2 = init_lin_classifier(k_p2, d_in2, n_class2)

    out2 = jax.block_until_ready(lin_classifier_forward(x2, w2, b2))
    ref2 = x2 @ w2.T + b2
    assert out2.shape == (B2, n_class2)
    assert jnp.allclose(out2, ref2, atol=1e-3, rtol=1e-4), "tiled-shape mismatch"

    print("KERNEL_OK")
</pallas_src>

<mosaic_0001>
module attributes {stable_mosaic.version = 11 : i64} {
  func.func @_linear_kernel(%arg0: i32, %arg1: i32, %arg2: memref<8x32xf32, #tpu.memory_space<vmem>>, %arg3: memref<32x128xf32, #tpu.memory_space<vmem>>, %arg4: memref<1x128xf32, #tpu.memory_space<vmem>>, %arg5: memref<8x128xf32, #tpu.memory_space<vmem>>) attributes {dimension_semantics = [#tpu.dimension_semantics<parallel>, #tpu.dimension_semantics<arbitrary>], iteration_bounds = array<i64: 1, 1>, scalar_prefetch = 0 : i64, scratch_operands = 0 : i64, tpu.core_type = #tpu.core_type<tc>, window_params = [{transform_indices = @transform_0, window_bounds = array<i64: 8, 32>}, {transform_indices = @transform_1, window_bounds = array<i64: 32, 128>}, {pipeline_mode = #tpu.pipeline_mode<synchronous>, transform_indices = @transform_2, window_bounds = array<i64: 1, 128>}, {transform_indices = @transform_3, window_bounds = array<i64: 8, 128>}]} {
    %c0_i32 = arith.constant 0 : i32
    %0 = arith.cmpi eq, %arg1, %c0_i32 : i32
    %1 = arith.extui %0 : i1 to i32
    %c0_i32_0 = arith.constant 0 : i32
    %2 = arith.cmpi ne, %1, %c0_i32_0 : i32
    scf.if %2 {
      %c0_8 = arith.constant 0 : index
      %c0_9 = arith.constant 0 : index
      %9 = vector.load %arg4[%c0_8, %c0_9] : memref<1x128xf32, #tpu.memory_space<vmem>>, vector<1x128xf32>
      %10 = vector.shape_cast %9 : vector<1x128xf32> to vector<1x128xf32>
      %11 = vector.broadcast %10 : vector<1x128xf32> to vector<8x128xf32>
      %c0_10 = arith.constant 0 : index
      %c0_11 = arith.constant 0 : index
      %12 = vector.load %arg5[%c0_10, %c0_11] : memref<8x128xf32, #tpu.memory_space<vmem>>, vector<8x128xf32>
      tpu.vector_store %arg5[%c0_10, %c0_11], %11 {strides = array<i32>} : memref<8x128xf32, #tpu.memory_space<vmem>>, vector<8x128xf32>,
    } else {
    }
    %c0 = arith.constant 0 : index
    %c0_1 = arith.constant 0 : index
    %3 = vector.load %arg2[%c0, %c0_1] : memref<8x32xf32, #tpu.memory_space<vmem>>, vector<8x32xf32>
    %c0_2 = arith.constant 0 : index
    %c0_3 = arith.constant 0 : index
    %4 = vector.load %arg5[%c0_2, %c0_3] : memref<8x128xf32, #tpu.memory_space<vmem>>, vector<8x128xf32>
    %c0_4 = arith.constant 0 : index
    %c0_5 = arith.constant 0 : index
    %5 = vector.load %arg3[%c0_4, %c0_5] : memref<32x128xf32, #tpu.memory_space<vmem>>, vector<32x128xf32>
    %cst = arith.constant dense<0.000000e+00> : vector<8x128xf32>
    %6 = tpu.matmul %3, %5, %cst {dimension_numbers = #tpu.dot_dimension_numbers<[1], [0], [0], [1], [0, 0, 1, 1], [], []>} : vector<8x32xf32>, vector<32x128xf32>, vector<8x128xf32> -> vector<8x128xf32>
    %7 = arith.addf %4, %6 : vector<8x128xf32>
    %c0_6 = arith.constant 0 : index
    %c0_7 = arith.constant 0 : index
    %8 = vector.load %arg5[%c0_6, %c0_7] : memref<8x128xf32, #tpu.memory_space<vmem>>, vector<8x128xf32>
    tpu.vector_store %arg5[%c0_6, %c0_7], %7 {strides = array<i32>} : memref<8x128xf32, #tpu.memory_space<vmem>>, vector<8x128xf32>,
    return
  }
  func.func @transform_0(%arg0: i32, %arg1: i32) -> (i32, i32) {
    %c0_i32 = arith.constant 0 : i32
    return %arg0, %arg1 : i32, i32
  }
  func.func @transform_1(%arg0: i32, %arg1: i32) -> (i32, i32) {
    %c0_i32 = arith.constant 0 : i32
    %c0_i32_0 = arith.constant 0 : i32
    return %arg1, %c0_i32 : i32, i32
  }
  func.func @transform_2(%arg0: i32, %arg1: i32) -> (i32, i32) {
    %c0_i32 = arith.constant 0 : i32
    %c0_i32_0 = arith.constant 0 : i32
    %c0_i32_1 = arith.constant 0 : i32
    return %c0_i32, %c0_i32_0 : i32, i32
  }
  func.func @transform_3(%arg0: i32, %arg1: i32) -> (i32, i32) {
    %c0_i32 = arith.constant 0 : i32
    %c0_i32_0 = arith.constant 0 : i32
    return %arg0, %c0_i32 : i32, i32
  }
}

</mosaic_0001>

<llo_original>
// kernel: lin_classifier_forward.1
$region0: #{lin_classifier_forward.1}
  #allocation0 [shape = 'u32[]', space=smem, size = 0x4, offset = 0x4, fixed_abs, tag = 'smem constant byte address 0x4 - core index']
  #allocation1 [shape = 'u32[144,128]{1,0:T(1,128)}', space=vmem, size = 0x12000, scoped, tag = 'internal scratch']
  %s0 = inlined_call_operand.vmem [shape: f32[8,32], index: 0, kind: input, shape index: {}]
  %s1 = inlined_call_operand.vmem [shape: f32[32,128], index: 1, kind: input, shape index: {}]
  %s2 = inlined_call_operand.vmem [shape: f32[1,128], index: 2, kind: input, shape index: {}]
  %s3 = inlined_call_operand.hbm [shape: f32[8,128], index: 3, kind: output, shape index: {}]
  %s4 = sld [smem:[#allocation0]]
  $region26: #{lin_classifier_forward.1} parent=0
    _
  %s6 = ssub.s32 1, %s4
  %s7 = scalar_select 0, %s6, %s4
  $region1: #{lin_classifier_forward.1} parent=0
    #allocation2 [shape = 'u8[4096]{0}', space=vmem, size = 0x1000, scoped, tag = 'output window, operand 0, single buffered']
    #allocation3 [shape = 's32[1]{0}', space=sflag, size = 0x4, scoped, tag = 'scoped memory for lin_classifier_forward.1']
    %8 = vsyncpa [#allocation3], 0
    // Predicated region
    $region2: #{lin_classifier_forward.1} parent=1 // pred_check
      _
    $region3: #{lin_classifier_forward.1} parent=1 // pred_check_branch
      %10 = sbr.rel (0) target = $region5
    $region4: #{lin_classifier_forward.1} parent=1 // pred_region
      _
    $region5: #{lin_classifier_forward.1} parent=1 // pred_fallthru
      _
    // Predicated region
    $region6: #{lin_classifier_forward.1} parent=1 // pred_check
      _
    $region7: #{lin_classifier_forward.1} parent=1 // pred_check_branch
      %12 = sbr.rel (0) target = $region9
    $region8: #{lin_classifier_forward.1} parent=1 // pred_region
      _
    $region9: #{lin_classifier_forward.1} parent=1 // pred_fallthru
      _
    // Predicated region
    $region10: #{lin_classifier_forward.1} parent=1 // pred_check
      _
    $region11: #{lin_classifier_forward.1} parent=1 // pred_check_branch
      %14 = sbr.rel (0) target = $region13
    $region12: #{lin_classifier_forward.1} parent=1 // pred_region
      _
    $region13: #{lin_classifier_forward.1} parent=1 // pred_fallthru
      _
    %p15 = scmp.eq.s32.totalorder 0, 0
    // Predicated region
    $region14: #{lin_classifier_forward.1} parent=1 // pred_check
      %p16 = pneg %p15
    $region15: #{lin_classifier_forward.1} parent=1 // pred_check_branch
      %18 = sbr.rel (%p16) target = $region17
    $region16: #{lin_classifier_forward.1} parent=1 // pred_region
      %v19 = vld [vmem:[%s2] sm:$0x1]
      %v21 = vlaneseq
      %v22 = vshrl.u32 %v21, 7
      %v23 = vsub.s32 0, %v22
      %v24 = vrot.slane %v19, %v23
      %26 = vst [vmem:[#allocation2] sm:$0xff] %v24
    $region17: #{lin_classifier_forward.1} parent=1 // pred_fallthru
      _
    %v27 = vld [vmem:[%s0] sm:$0xff]
    %v28 = vld [vmem:[#allocation2] sm:$0xff]
    %v29 = vld [vmem:[%s1] sm:$0xff]
    %v30 = vld [vmem:[%s1 + $0x8] sm:$0xff]
    %v31 = vld [vmem:[%s1 + $0x10] sm:$0xff]
    %v32 = vld [vmem:[%s1 + $0x18] sm:$0xff]
    %vm33 = vcmask 261120
    %v35 = vsel %vm33, %v27, 0
    %37 = vmatprep.subr.mxu0 0.0
    %38 = vmatpush1.msra.mxu0 %v29
    %39 = vmatprep.subr.mxu0 0.0
    %40 = vmatpush1.msra.mxu0 %v30
    %41 = vmatprep.subr.mxu0 0.0
    %42 = vmatpush1.msra.mxu0 %v31
    %43 = vmatprep.subr.mxu0 0.0
    %44 = vmatpush1.msra.mxu0 %v32
    %45 = vmatprep.subr.mxu0 0.0
    %46 = vmatpush1.msra.mxu0 0.0
    %47 = vmatprep.subr.mxu0 0.0
    %48 = vmatpush1.msra.mxu0 0.0
    %49 = vmatprep.subr.mxu0 0.0
    %50 = vmatpush1.msra.mxu0 0.0
    %51 = vmatprep.subr.mxu0 0.0
    %52 = vmatpush1.msra.mxu0 0.0
    %53 = vmatprep.subr.mxu0 0.0
    %54 = vmatpush1.msra.mxu0 0.0
    %55 = vmatprep.subr.mxu0 0.0
    %56 = vmatpush1.msra.mxu0 0.0
    %57 = vmatprep.subr.mxu0 0.0
    %58 = vmatpush1.msra.mxu0 0.0
    %59 = vmatprep.subr.mxu0 0.0
    %60 = vmatpush1.msra.mxu0 0.0
    %61 = vmatprep.subr.mxu0 0.0
    %62 = vmatpush1.msra.mxu0 0.0
    %63 = vmatprep.subr.mxu0 0.0
    %64 = vmatpush1.msra.mxu0 0.0
    %65 = vmatprep.subr.mxu0 0.0
    %66 = vmatpush1.msra.mxu0 0.0
    %67 = vmatprep.subr.mxu0 0.0
    %68 = vmatpush1.msra.mxu0 0.0
    %69 = vmatprep.subr.mxu0 0.0
    %70 = vmatpush1.msra.mxu0 0.0
    %71 = vmatprep.subr.mxu0 0.0
    %72 = vmatpush1.msra.mxu0 0.0
    %73 = vmatprep.subr.mxu0 0.0
    %74 = vmatpush1.msra.mxu0 0.0
    %75 = vmatprep.subr.mxu0 0.0
    %76 = vmatpush1.msra.mxu0 0.0
    %77 = vmatprep.subr.mxu0 0.0
    %78 = vmatpush1.msra.mxu0 0.0
    %79 = vmatprep.subr.mxu0 0.0
    %80 = vmatpush1.msra.mxu0 0.0
    %81 = vmatprep.subr.mxu0 0.0
    %82 = vmatpush1.msra.mxu0 0.0
    %83 = vmatprep.subr.mxu0 0.0
    %84 = vmatpush1.msra.mxu0 0.0
    %85 = vmatprep.subr.mxu0 0.0
    %86 = vmatpush1.msra.mxu0 0.0
    %87 = vmatprep.subr.mxu0 0.0
    %88 = vmatpush1.msra.mxu0 0.0
    %89 = vmatprep.subr.mxu0 0.0
    %90 = vmatpush1.msra.mxu0 0.0
    %91 = vmatprep.subr.mxu0 0.0
    %92 = vmatpush1.msra.mxu0 0.0
    %93 = vmatprep.subr.mxu0 0.0
    %94 = vmatpush1.msra.mxu0 0.0
    %95 = vmatprep.subr.mxu0 0.0
    %96 = vmatpush1.msra.mxu0 0.0
    %97 = vmatprep.subr.mxu0 0.0
    %98 = vmatpush1.msra.mxu0 0.0
    %99 = vmatprep.subr.mxu0 0.0
    %100 = vmatpush1.msra.mxu0 0.0
    %101 = vmatprep.mubr.f32.mxu0 0.0
    %102 = vmatmul.mubr.f32.gmra.mrb[0].mxu0 %v35
    %v103 = vpop.f32.mrb[0].mxu0
    %v104 = vadd.f32 0.0, %v103
    %v105 = vpop.f32.mrb[0].mxu0
    %106 = vdwg.mxu0
    %v107 = vadd.f32 %v28, %v104
    %108 = vst [vmem:[#allocation2] sm:$0xff] %v107
    // Predicated region
    $region18: #{lin_classifier_forward.1} parent=1 // pred_check
      _
    $region19: #{lin_classifier_forward.1} parent=1 // pred_check_branch
      %110 = sbr.rel (0) target = $region21
    $region20: #{lin_classifier_forward.1} parent=1 // pred_region
      %s112 = ssub.s32 128, 128
      %113 = vsyncadd [#allocation3], %s112
      %s115 = sshll.u32 [#allocation2], 4
      %s116 = int_to_ptr.vmem [resolvable:$true] %s115
      %118 = dma.vmem_to_hbm [thread:$0]  %s116, 128, %s3, [#allocation3]
    $region21: #{lin_classifier_forward.1} parent=1 // pred_fallthru
      _
    // Predicated region
    $region22: #{lin_classifier_forward.1} parent=1 // pred_check
      _
    $region23: #{lin_classifier_forward.1} parent=1 // pred_check_branch
      %120 = sbr.rel (0) target = $region25
    $region24: #{lin_classifier_forward.1} parent=1 // pred_region
      %121 = dma.done [#allocation3], 128
    $region25: #{lin_classifier_forward.1} parent=1 // pred_fallthru
      _
    %122 = vsyncpa [#allocation3], 1

</llo_original>
